<compile_context>
chip_gen: v7x
topology: tpu7x:2x2x1
jax: 0.10.0
libtpu: 0.0.40
codegen_flags: <defaults>
</compile_context>

<pallas_src>
import functools

import jax
import jax.numpy as jnp
from jax import lax
from jax.experimental import pallas as pl
from jax.experimental.pallas import tpu as pltpu


# --------------------------------------------------------------------------- #
# Kernel
# --------------------------------------------------------------------------- #
def _topk_sum(y, k, *, unroll_cap=4):
    """Sum of the k largest entries along the last axis of y ((Rb, L) f32).

    Extraction loop: per step, take every lane equal to the running max
    (capped by the remaining count), then mask them out.  Ties are counted
    with multiplicity, matching a sort-then-narrow reference.
    """
    rb = y.shape[0]
    neg_inf = jnp.float32(-jnp.inf)
    acc0 = jnp.zeros((rb, 1), jnp.float32)
    rem0 = jnp.full((rb, 1), float(k), jnp.float32)

    def step(_, carry):
        acc, rem, ym = carry
        m = jnp.max(ym, axis=-1, keepdims=True)                       # (Rb, 1)
        is_m = ym == m
        cnt = jnp.sum(is_m.astype(jnp.float32), axis=-1, keepdims=True)
        take = jnp.minimum(cnt, rem)
        # Fused select+mul; also guards the (-inf) * 0 -> NaN case.
        acc = acc + jnp.where(take > 0.0, m * take, 0.0)
        rem = rem - take
        ym = jnp.where(is_m, neg_inf, ym)
        return acc, rem, ym

    unroll = k if k <= 8 else unroll_cap
    acc, _, _ = lax.fori_loop(0, k, step, (acc0, rem0, y), unroll=unroll)
    return acc


def _wildcat_kernel(x_ref, o_ref, *, kmax, kmin, alpha):
    # x_ref: (Rb, L) in the input dtype; o_ref: (Rb, 1) float32.
    x = x_ref[...]
    need_f32 = (kmax > 1) or (kmin > 1)
    xf = x.astype(jnp.float32) if need_f32 else None

    # ---- top-kmax (largest values of x) ----
    if kmax == 1:
        top_sum = jnp.max(x, axis=-1, keepdims=True).astype(jnp.float32)
    else:
        top_sum = _topk_sum(xf, kmax)
    result = top_sum / jnp.float32(kmax)

    # ---- bottom-kmin (smallest values of x) ----
    if kmin > 0:
        if kmin == 1:
            bot_sum = jnp.min(x, axis=-1, keepdims=True).astype(jnp.float32)
        else:
            # bottom-k sum of x == -(top-k sum of -x)
            bot_sum = -_topk_sum(-xf, kmin)
        result = result + jnp.float32(alpha) * (bot_sum / jnp.float32(kmin))

    o_ref[...] = result


# --------------------------------------------------------------------------- #
# Wrapper
# --------------------------------------------------------------------------- #
def _resolve_k(kv, L):
    # Matches the PyTorch module, clamped to [1, L] to avoid its 0/0 NaN when a
    # fractional k rounds to 0 (documented deviation).
    ki = int(round(L * kv)) if kv < 1 else int(kv)
    return max(1, min(ki, L))


def wildcat_pooling(x, kmax=1, kmin=None, alpha=0.6, block_rows=None):
    """x: (N, C, H, W) -> (N, C), matching WildCatPooling.forward."""
    N, C, H, W = x.shape
    L = H * W

    kmax_i = _resolve_k(kmax, L)
    kmin_v = kmax if kmin is None else kmin
    kmin_i = _resolve_k(kmin_v, L) if kmin_v else 0
    general_k = (kmax_i > 1) or (kmin_i > 1)

    rows = N * C
    x2 = x.reshape(rows, L)                 # keep source dtype; cast in-kernel
    itemsize = jnp.dtype(x.dtype).itemsize

    # ---- hardware-aware row-block sizing (no fixed 1024-row cap, no padding) --
    vmem_cap = 64 * 1024 * 1024             # conservative default (v7x per-TC)
    try:
        vmem_cap = int(pltpu.get_tpu_info().vmem_capacity_bytes)
    except Exception:
        pass
    small_vmem = vmem_cap <= 64 * 1024 * 1024   # v7x (or unknown)

    # Live per-row bytes: double-buffered input block + f32 (Rb, L) slabs the
    # kernel keeps alive (cast + per-chain carries + temps for general k).
    n_f32_slabs = 5 if general_k else 1
    per_row_bytes = 2 * L * itemsize + n_f32_slabs * L * 4
    budget = (24 if small_vmem else 72) * 1024 * 1024

    row_align = 16 if itemsize < 4 else 8
    rb = max(row_align, (budget // per_row_bytes) // row_align * row_align)

    if small_vmem and rows > 8 * row_align:
        # Keep >= ~8 blocks so the "parallel" axis can shard across v7x's two
        # TensorCores — but never shrink blocks below ~1 MiB of working set.
        rb_cap = (((rows + 7) // 8) + row_align - 1) // row_align * row_align
        if rb_cap * per_row_bytes >= (1 << 20):
            rb = min(rb, rb_cap)

    if block_rows is not None:              # test/override hook
        rb = max(row_align, (int(block_rows) // row_align) * row_align)

    if rb >= rows:
        rb = rows                           # single full block (== array dim: legal)
    num_blocks = (rows + rb - 1) // rb      # ragged last block; no jnp.pad copy

    # Request only what we need (+ margin); clamp per generation.
    vmem_need = rb * per_row_bytes + 2 * rb * 4 + (4 << 20)
    vmem_hi = (vmem_cap // 2) if small_vmem else min(100 << 20, vmem_cap - (16 << 20))
    vmem_limit = int(min(vmem_hi, max(vmem_need, 32 << 20)))

    kernel = functools.partial(
        _wildcat_kernel, kmax=kmax_i, kmin=kmin_i, alpha=float(alpha)
    )

    out = pl.pallas_call(
        kernel,
        out_shape=jax.ShapeDtypeStruct((rows, 1), jnp.float32),
        grid_spec=pltpu.PrefetchScalarGridSpec(
            num_scalar_prefetch=0,
            grid=(num_blocks,),
            # Lane extent = full L (legal since it equals the array dim), so no
            # lane padding / validity masking is needed in the kernel.
            in_specs=[pl.BlockSpec((rb, L), lambda i: (i, 0))],
            out_specs=pl.BlockSpec((rb, 1), lambda i: (i, 0)),
        ),
        compiler_params=pltpu.CompilerParams(
            dimension_semantics=("parallel",),
            vmem_limit_bytes=vmem_limit,
        ),
    )(x2)

    return out[:, 0].reshape(N, C).astype(x.dtype)


# --------------------------------------------------------------------------- #
# Pure-JAX reference (mirrors the PyTorch forward)
# --------------------------------------------------------------------------- #
def wildcat_pooling_ref(x, kmax=1, kmin=None, alpha=0.6):
    N, C, H, W = x.shape
    L = H * W
    activs = x.reshape(N, C, L).astype(jnp.float32)
    activs = -jnp.sort(-activs, axis=-1)    # descending
    kmax_i = _resolve_k(kmax, L)
    scmax = activs[..., :kmax_i].sum(-1) / kmax_i
    kmin_v = kmax if kmin is None else kmin
    scmin = 0.0
    if kmin_v:
        kmin_i = _resolve_k(kmin_v, L)
        scmin = activs[..., L - kmin_i:].sum(-1) / kmin_i
    return scmax + alpha * scmin


if __name__ == "__main__":
    key = jax.random.PRNGKey(0)

    # 1) Default module config (kmax=1, kmin=None -> 1, alpha=0.6): fast path.
    N, C, H, W = 2, 4, 16, 16
    x = jax.random.normal(key, (N, C, H, W), dtype=jnp.float32)
    out = wildcat_pooling(x, kmax=1, kmin=None, alpha=0.6)
    jax.block_until_ready(out)
    ref = wildcat_pooling_ref(x, kmax=1, kmin=None, alpha=0.6)
    assert out.shape == (N, C)
    assert jnp.allclose(out, ref, atol=1e-5, rtol=1e-5), (out, ref)

    # 2) Fractional kmax / kmin (general-k extraction-loop path, per-chain trips).
    out2 = wildcat_pooling(x, kmax=0.1, kmin=0.05, alpha=0.7)
    jax.block_until_ready(out2)
    ref2 = wildcat_pooling_ref(x, kmax=0.1, kmin=0.05, alpha=0.7)
    assert jnp.allclose(out2, ref2, atol=1e-5, rtol=1e-5), (out2, ref2)

    # 3) Ragged grid (rows=20 not a multiple of the 8-row block) + small integer k.
    k2 = jax.random.PRNGKey(1)
    x3 = jax.random.normal(k2, (4, 5, 7, 7), dtype=jnp.float32)
    out3 = wildcat_pooling(x3, kmax=2, kmin=2, alpha=0.5, block_rows=8)
    jax.block_until_ready(out3)
    ref3 = wildcat_pooling_ref(x3, kmax=2, kmin=2, alpha=0.5)
    assert jnp.allclose(out3, ref3, atol=1e-5, rtol=1e-5), (out3, ref3)

    print("KERNEL_OK")
</pallas_src>

<mosaic_0001>
module attributes {stable_mosaic.version = 11 : i64} {
  func.func @_wildcat_kernel(%arg0: i32, %arg1: memref<8x256xf32, #tpu.memory_space<vmem>>, %arg2: memref<8x1xf32, #tpu.memory_space<vmem>>) attributes {dimension_semantics = [#tpu.dimension_semantics<parallel>], iteration_bounds = array<i64: 1>, scalar_prefetch = 0 : i64, scratch_operands = 0 : i64, tpu.core_type = #tpu.core_type<tc>, window_params = [{transform_indices = @transform_0, window_bounds = array<i64: 8, 256>}, {transform_indices = @transform_1, window_bounds = array<i64: 8, 1>}]} {
    %c0 = arith.constant 0 : index
    %c0_0 = arith.constant 0 : index
    %0 = vector.load %arg1[%c0, %c0_0] : memref<8x256xf32, #tpu.memory_space<vmem>>, vector<8x256xf32>
    %cst = arith.constant dense<0xFF800000> : vector<8xf32>
    %1 = vector.multi_reduction <maximumf>, %0, %cst [1] : vector<8x256xf32> to vector<8xf32>
    %2 = vector.shape_cast %1 : vector<8xf32> to vector<8x1xf32>
    %cst_1 = arith.constant 1.000000e+00 : f32
    %3 = vector.broadcast %cst_1 : f32 to vector<8x1xf32>
    %4 = arith.divf %2, %3 : vector<8x1xf32>
    %cst_2 = arith.constant dense<0x7F800000> : vector<8xf32>
    %5 = vector.multi_reduction <minimumf>, %0, %cst_2 [1] : vector<8x256xf32> to vector<8xf32>
    %6 = vector.shape_cast %5 : vector<8xf32> to vector<8x1xf32>
    %cst_3 = arith.constant 1.000000e+00 : f32
    %7 = vector.broadcast %cst_3 : f32 to vector<8x1xf32>
    %8 = arith.divf %6, %7 : vector<8x1xf32>
    %cst_4 = arith.constant 6.000000e-01 : f32
    %9 = vector.broadcast %cst_4 : f32 to vector<8x1xf32>
    %10 = arith.mulf %9, %8 : vector<8x1xf32>
    %11 = arith.addf %4, %10 : vector<8x1xf32>
    %c0_5 = arith.constant 0 : index
    %c0_6 = arith.constant 0 : index
    %12 = vector.load %arg2[%c0_5, %c0_6] : memref<8x1xf32, #tpu.memory_space<vmem>>, vector<8x1xf32>
    tpu.vector_store %arg2[%c0_5, %c0_6], %11 {strides = array<i32>} : memref<8x1xf32, #tpu.memory_space<vmem>>, vector<8x1xf32>,
    return
  }
  func.func @transform_0(%arg0: i32) -> (i32, i32) {
    %c0_i32 = arith.constant 0 : i32
    %c0_i32_0 = arith.constant 0 : i32
    return %arg0, %c0_i32 : i32, i32
  }
  func.func @transform_1(%arg0: i32) -> (i32, i32) {
    %c0_i32 = arith.constant 0 : i32
    %c0_i32_0 = arith.constant 0 : i32
    return %arg0, %c0_i32 : i32, i32
  }
}

</mosaic_0001>

<llo_original>
// kernel: tpu_custom_call.1
$region0: #{tpu_custom_call.1}
  #allocation0 [shape = 'u32[]', space=smem, size = 0x4, offset = 0x4, fixed_abs, tag = 'smem constant byte address 0x4 - core index']
  #allocation1 [shape = 'u32[144,128]{1,0:T(1,128)}', space=vmem, size = 0x12000, scoped, tag = 'internal scratch']
  %s0 = inlined_call_operand.hbm [shape: f32[8,256], index: 0, kind: input, shape index: {}]
  %s1 = inlined_call_operand.vmem [shape: f32[8,1], index: 1, kind: output, shape index: {}]
  %s2 = sld [smem:[#allocation0]]
  $region18: #{tpu_custom_call.1} parent=0
    _
  %s4 = ssub.s32 1, %s2
  %s5 = scalar_select 0, %s4, %s2
  $region1: #{tpu_custom_call.1} parent=0
    #allocation2 [shape = 'u8[8192]{0}', space=vmem, size = 0x2000, scoped, tag = 'input window, operand 0, single buffered']
    #allocation3 [shape = 's32[1]{0}', space=sflag, size = 0x4, scoped, tag = 'scoped memory for tpu_custom_call.1']
    %6 = vsyncpa [#allocation3], 0
    // Predicated region
    $region2: #{tpu_custom_call.1} parent=1 // pred_check
      _
    $region3: #{tpu_custom_call.1} parent=1 // pred_check_branch
      %8 = sbr.rel (0) target = $region5
    $region4: #{tpu_custom_call.1} parent=1 // pred_region
      %s10 = ssub.s32 256, 256
      %11 = vsyncadd [#allocation3], %s10
      %s13 = sshll.u32 [#allocation2], 4
      %s14 = int_to_ptr.vmem [resolvable:$true] %s13
      %16 = dma.hbm_to_vmem [thread:$0]  %s0, 256, %s14, [#allocation3]
    $region5: #{tpu_custom_call.1} parent=1 // pred_fallthru
      _
    // Predicated region
    $region6: #{tpu_custom_call.1} parent=1 // pred_check
      _
    $region7: #{tpu_custom_call.1} parent=1 // pred_check_branch
      %18 = sbr.rel (0) target = $region9
    $region8: #{tpu_custom_call.1} parent=1 // pred_region
      %19 = dma.done [#allocation3], 256
    $region9: #{tpu_custom_call.1} parent=1 // pred_fallthru
      _
    %v20 = vld [vmem:[#allocation2] sm:$0xff]
    %v21 = vld [vmem:[#allocation2 + $0x8] sm:$0xff]
    %v22 = vmax.f32 %v20, %v21
    %23 = vmax.xlane.f32.xlu0 %v22
    %v24 = vpop.xlane.xlu0 %23
    %v25 = vmin.f32 %v20, %v21
    %26 = vmin.xlane.f32.xlu0 %v25
    %v27 = vpop.xlane.xlu0 %26
    %v28 = vmul.f32 %v27, 0.6
    %v29 = vadd.f32 %v24, %v28
    %vm30 = vcmask 7168
    %31 = vst.msk [vmem:[%s1] sm:$0xff] %vm30, %v29
    // Predicated region
    $region10: #{tpu_custom_call.1} parent=1 // pred_check
      _
    $region11: #{tpu_custom_call.1} parent=1 // pred_check_branch
      %33 = sbr.rel (0) target = $region13
    $region12: #{tpu_custom_call.1} parent=1 // pred_region
      _
    $region13: #{tpu_custom_call.1} parent=1 // pred_fallthru
      _
    // Predicated region
    $region14: #{tpu_custom_call.1} parent=1 // pred_check
      _
    $region15: #{tpu_custom_call.1} parent=1 // pred_check_branch
      %35 = sbr.rel (0) target = $region17
    $region16: #{tpu_custom_call.1} parent=1 // pred_region
      _
    $region17: #{tpu_custom_call.1} parent=1 // pred_fallthru
      _
    %36 = vsyncpa [#allocation3], 1

</llo_original>
